<compile_context>
chip_gen: v6e
topology: v6e:2x2x1
jax: 0.10.0
libtpu: 0.0.40
codegen_flags: <defaults>
</compile_context>

<pallas_src>
import functools

import jax
import jax.numpy as jnp
from jax.experimental import pallas as pl
from jax.experimental.pallas import tpu as pltpu

_LANES = 128
# (tile_rows, 128) f32 = 512 KiB per buffer; 2 inputs x 2 pipeline buffers
# + 2 accumulators ~= 3 MiB VMEM -> safe on v5e/v6e/v7x scoped defaults.
_MAX_TILE_ROWS = 1024


def _fscore_kernel(pr_ref, gt_ref, out_ref, acc_tp_ref, acc_den_ref, *,
                   beta2, eps, threshold, apply_sigmoid, n_valid, tile_rows):
    i = pl.program_id(0)
    n_tiles = pl.num_programs(0)

    @pl.when(i == 0)
    def _():
        acc_tp_ref[...] = jnp.zeros_like(acc_tp_ref)
        acc_den_ref[...] = jnp.zeros_like(acc_den_ref)

    pr = pr_ref[...].astype(jnp.float32)
    gt = gt_ref[...].astype(jnp.float32)

    if apply_sigmoid:
        pr = jax.nn.sigmoid(pr)  # EUP; free slot on a mem-bound kernel

    # Mask elements past the true flattened length (lane padding + the ragged
    # final row-block Pallas pads for us). jnp.where is a select, so even
    # NaN/Inf garbage in the padded region is neutralized.
    row_idx = jax.lax.broadcasted_iota(jnp.int32, pr.shape, 0)
    lane_idx = jax.lax.broadcasted_iota(jnp.int32, pr.shape, 1)
    gidx = (i * tile_rows + row_idx) * _LANES + lane_idx
    valid = gidx < n_valid

    if threshold is not None:
        pr_b = jnp.where(pr > threshold, 1.0, 0.0)
    else:
        pr_b = pr
    pr_b = jnp.where(valid, pr_b, 0.0)
    gt_v = jnp.where(valid, gt, 0.0)

    # Pure VPU vreg-shaped partial accumulation; no per-step XLU reduce.
    acc_tp_ref[...] += gt_v * pr_b
    acc_den_ref[...] += pr_b + beta2 * gt_v

    @pl.when(i == n_tiles - 1)
    def _():
        tp = jnp.sum(acc_tp_ref[...])
        den = jnp.sum(acc_den_ref[...])
        score = ((1.0 + beta2) * tp + eps) / (den + eps)
        out_ref[0, 0] = score


def fscore(y_pr, y_gt, *, beta=1.0, eps=1e-7, threshold=0.5,
           activation=None, ignore_channels=None, max_tile_rows=_MAX_TILE_ROWS):
    """F-score between prediction and ground truth (Fscore.forward)."""
    assert y_pr.shape == y_gt.shape

    if ignore_channels is not None:
        keep = [c for c in range(y_pr.shape[1]) if c not in ignore_channels]
        idx = jnp.asarray(keep, dtype=jnp.int32)
        y_pr = jnp.take(y_pr, idx, axis=1)
        y_gt = jnp.take(y_gt, idx, axis=1)

    if activation is None or activation == "identity":
        apply_sigmoid = False
    elif activation == "sigmoid":
        apply_sigmoid = True  # fused into the kernel, no extra HBM pass
    else:
        # TODO(synk): softmax/argmax activations not implemented (default is identity).
        raise NotImplementedError(f"activation={activation!r} not supported")

    pr = jnp.reshape(y_pr, (-1,))
    gt = jnp.reshape(y_gt, (-1,))
    n = pr.shape[0]

    # Lane-align only when necessary (at most 127 elements); the in-kernel
    # mask makes the padded values irrelevant. For lane-aligned inputs this
    # branch is skipped -> no extra HBM read/write pass.
    pad = (-n) % _LANES
    if pad:
        pr = jnp.pad(pr, (0, pad))
        gt = jnp.pad(gt, (0, pad))

    rows = pr.shape[0] // _LANES
    pr2 = pr.reshape(rows, _LANES)
    gt2 = gt.reshape(rows, _LANES)

    # Largest tile that fits comfortably in VMEM; if the whole array is small,
    # use its full row extent (block == full dim is always legal).
    tile_rows = rows if rows <= max_tile_rows else max_tile_rows
    n_tiles = pl.cdiv(rows, tile_rows)

    kernel = functools.partial(
        _fscore_kernel,
        beta2=float(beta) ** 2,
        eps=float(eps),
        threshold=None if threshold is None else float(threshold),
        apply_sigmoid=apply_sigmoid,
        n_valid=int(n),
        tile_rows=int(tile_rows),
    )

    bytes_in = n * (jnp.dtype(pr2.dtype).itemsize + jnp.dtype(gt2.dtype).itemsize)
    out = pl.pallas_call(
        kernel,
        out_shape=jax.ShapeDtypeStruct((1, 1), jnp.float32),
        grid=(n_tiles,),
        in_specs=[
            pl.BlockSpec((tile_rows, _LANES), lambda i: (i, 0)),
            pl.BlockSpec((tile_rows, _LANES), lambda i: (i, 0)),
        ],
        out_specs=pl.BlockSpec(memory_space=pltpu.MemorySpace.SMEM),
        scratch_shapes=[
            pltpu.VMEM((tile_rows, _LANES), jnp.float32),
            pltpu.VMEM((tile_rows, _LANES), jnp.float32),
        ],
        compiler_params=pltpu.CompilerParams(
            dimension_semantics=("arbitrary",),
        ),
        cost_estimate=pl.CostEstimate(
            flops=6 * n,
            transcendentals=(n if apply_sigmoid else 0),
            bytes_accessed=bytes_in,
        ),
    )(pr2, gt2)
    return out[0, 0]


def _fscore_ref(y_pr, y_gt, beta=1.0, eps=1e-7, threshold=0.5):
    pr = y_pr
    if threshold is not None:
        pr = (pr > threshold).astype(pr.dtype)
    gt = y_gt.astype(jnp.float32)
    pr = pr.astype(jnp.float32)
    tp = jnp.sum(gt * pr)
    fp = jnp.sum(pr) - tp
    fn = jnp.sum(gt) - tp
    b2 = beta ** 2
    return ((1.0 + b2) * tp + eps) / ((1.0 + b2) * tp + b2 * fn + fp + eps)


if __name__ == "__main__":
    key = jax.random.PRNGKey(0)

    # Test 1: default Fscore config on a small segmentation-head shape [B,C,H,W].
    k_pr, k_gt = jax.random.split(key)
    shape = (2, 4, 16, 16)
    y_pr = jax.nn.sigmoid(jax.random.normal(k_pr, shape, dtype=jnp.float32))
    y_gt = (jax.random.uniform(k_gt, shape) > 0.5).astype(jnp.float32)

    score = jax.block_until_ready(fscore(y_pr, y_gt))
    ref = _fscore_ref(y_pr, y_gt)
    assert jnp.allclose(score, ref, rtol=1e-5, atol=1e-6), (score, ref)

    # Test 2: non-lane-aligned shape with a multi-tile grid and a ragged final
    # row-block, to exercise the accumulator / masking path.
    k_pr2, k_gt2 = jax.random.split(jax.random.PRNGKey(1))
    shape2 = (3, 4, 31, 33)  # 12276 elements -> pads to 96 rows of 128
    y_pr2 = jax.nn.sigmoid(jax.random.normal(k_pr2, shape2, dtype=jnp.float32))
    y_gt2 = (jax.random.uniform(k_gt2, shape2) > 0.5).astype(jnp.float32)

    score2 = jax.block_until_ready(fscore(y_pr2, y_gt2, max_tile_rows=40))
    ref2 = _fscore_ref(y_pr2, y_gt2)
    assert jnp.allclose(score2, ref2, rtol=1e-5, atol=1e-6), (score2, ref2)

    print("KERNEL_OK")
</pallas_src>

<mosaic_0001>
module attributes {stable_mosaic.version = 11 : i64} {
  func.func @_fscore_kernel(%arg0: i32, %arg1: memref<16x128xf32, #tpu.memory_space<vmem>>, %arg2: memref<16x128xf32, #tpu.memory_space<vmem>>, %arg3: memref<1x1xf32, #tpu.memory_space<smem>>, %arg4: memref<16x128xf32, #tpu.memory_space<vmem>>, %arg5: memref<16x128xf32, #tpu.memory_space<vmem>>) attributes {dimension_semantics = [#tpu.dimension_semantics<arbitrary>], iteration_bounds = array<i64: 1>, scalar_prefetch = 0 : i64, scratch_operands = 2 : i64, tpu.core_type = #tpu.core_type<tc>, window_params = [{transform_indices = @transform_0, window_bounds = array<i64: 16, 128>}, {transform_indices = @transform_1, window_bounds = array<i64: 16, 128>}, {transform_indices = @transform_2, window_bounds = array<i64: 1, 1>}]} {
    %c0_i32 = arith.constant 0 : i32
    %0 = arith.cmpi eq, %arg0, %c0_i32 : i32
    %1 = arith.extui %0 : i1 to i32
    %c0_i32_0 = arith.constant 0 : i32
    %2 = arith.cmpi ne, %1, %c0_i32_0 : i32
    scf.if %2 {
      %cst_19 = arith.constant 0.000000e+00 : f32
      %37 = vector.broadcast %cst_19 : f32 to vector<16x128xf32>
      %c0_20 = arith.constant 0 : index
      %c0_21 = arith.constant 0 : index
      %38 = vector.load %arg4[%c0_20, %c0_21] : memref<16x128xf32, #tpu.memory_space<vmem>>, vector<16x128xf32>
      tpu.vector_store %arg4[%c0_20, %c0_21], %37 {strides = array<i32>} : memref<16x128xf32, #tpu.memory_space<vmem>>, vector<16x128xf32>,
      %cst_22 = arith.constant 0.000000e+00 : f32
      %39 = vector.broadcast %cst_22 : f32 to vector<16x128xf32>
      %c0_23 = arith.constant 0 : index
      %c0_24 = arith.constant 0 : index
      %40 = vector.load %arg5[%c0_23, %c0_24] : memref<16x128xf32, #tpu.memory_space<vmem>>, vector<16x128xf32>
      tpu.vector_store %arg5[%c0_23, %c0_24], %39 {strides = array<i32>} : memref<16x128xf32, #tpu.memory_space<vmem>>, vector<16x128xf32>,
    } else {
    }
    %c0 = arith.constant 0 : index
    %c0_1 = arith.constant 0 : index
    %3 = vector.load %arg1[%c0, %c0_1] : memref<16x128xf32, #tpu.memory_space<vmem>>, vector<16x128xf32>
    %c0_2 = arith.constant 0 : index
    %c0_3 = arith.constant 0 : index
    %4 = vector.load %arg2[%c0_2, %c0_3] : memref<16x128xf32, #tpu.memory_space<vmem>>, vector<16x128xf32>
    %5 = tpu.iota {dimensions = array<i32: 0>} : vector<16x128xi32>
    %6 = tpu.iota {dimensions = array<i32: 1>} : vector<16x128xi32>
    %c16_i32 = arith.constant 16 : i32
    %7 = arith.muli %arg0, %c16_i32 : i32
    %8 = vector.broadcast %7 : i32 to vector<16x128xi32>
    %9 = arith.addi %8, %5 : vector<16x128xi32>
    %c128_i32 = arith.constant 128 : i32
    %10 = vector.broadcast %c128_i32 : i32 to vector<16x128xi32>
    %11 = arith.muli %9, %10 : vector<16x128xi32>
    %12 = arith.addi %11, %6 : vector<16x128xi32>
    %c2048_i32 = arith.constant 2048 : i32
    %13 = vector.broadcast %c2048_i32 : i32 to vector<16x128xi32>
    %14 = arith.cmpi slt, %12, %13 : vector<16x128xi32>
    %cst = arith.constant 5.000000e-01 : f32
    %15 = vector.broadcast %cst : f32 to vector<16x128xf32>
    %16 = arith.cmpf ogt, %3, %15 : vector<16x128xf32>
    %cst_4 = arith.constant 1.000000e+00 : f32
    %cst_5 = arith.constant 0.000000e+00 : f32
    %17 = vector.broadcast %cst_4 : f32 to vector<16x128xf32>
    %18 = vector.broadcast %cst_5 : f32 to vector<16x128xf32>
    %19 = arith.select %16, %17, %18 : vector<16x128xi1>, vector<16x128xf32>
    %cst_6 = arith.constant 0.000000e+00 : f32
    %20 = vector.broadcast %cst_6 : f32 to vector<16x128xf32>
    %21 = arith.select %14, %19, %20 : vector<16x128xi1>, vector<16x128xf32>
    %cst_7 = arith.constant 0.000000e+00 : f32
    %22 = vector.broadcast %cst_7 : f32 to vector<16x128xf32>
    %23 = arith.select %14, %4, %22 : vector<16x128xi1>, vector<16x128xf32>
    %c0_8 = arith.constant 0 : index
    %c0_9 = arith.constant 0 : index
    %24 = vector.load %arg4[%c0_8, %c0_9] : memref<16x128xf32, #tpu.memory_space<vmem>>, vector<16x128xf32>
    %25 = arith.mulf %23, %21 : vector<16x128xf32>
    %26 = arith.addf %24, %25 : vector<16x128xf32>
    %c0_10 = arith.constant 0 : index
    %c0_11 = arith.constant 0 : index
    %27 = vector.load %arg4[%c0_10, %c0_11] : memref<16x128xf32, #tpu.memory_space<vmem>>, vector<16x128xf32>
    tpu.vector_store %arg4[%c0_10, %c0_11], %26 {strides = array<i32>} : memref<16x128xf32, #tpu.memory_space<vmem>>, vector<16x128xf32>,
    %c0_12 = arith.constant 0 : index
    %c0_13 = arith.constant 0 : index
    %28 = vector.load %arg5[%c0_12, %c0_13] : memref<16x128xf32, #tpu.memory_space<vmem>>, vector<16x128xf32>
    %cst_14 = arith.constant 1.000000e+00 : f32
    %29 = vector.broadcast %cst_14 : f32 to vector<16x128xf32>
    %30 = arith.mulf %29, %23 : vector<16x128xf32>
    %31 = arith.addf %21, %30 : vector<16x128xf32>
    %32 = arith.addf %28, %31 : vector<16x128xf32>
    %c0_15 = arith.constant 0 : index
    %c0_16 = arith.constant 0 : index
    %33 = vector.load %arg5[%c0_15, %c0_16] : memref<16x128xf32, #tpu.memory_space<vmem>>, vector<16x128xf32>
    tpu.vector_store %arg5[%c0_15, %c0_16], %32 {strides = array<i32>} : memref<16x128xf32, #tpu.memory_space<vmem>>, vector<16x128xf32>,
    %c0_i32_17 = arith.constant 0 : i32
    %34 = arith.cmpi eq, %arg0, %c0_i32_17 : i32
    %35 = arith.extui %34 : i1 to i32
    %c0_i32_18 = arith.constant 0 : i32
    %36 = arith.cmpi ne, %35, %c0_i32_18 : i32
    scf.if %36 {
      %c0_19 = arith.constant 0 : index
      %c0_20 = arith.constant 0 : index
      %37 = vector.load %arg4[%c0_19, %c0_20] : memref<16x128xf32, #tpu.memory_space<vmem>>, vector<16x128xf32>
      %38 = vector.shape_cast %37 : vector<16x128xf32> to vector<1x16x128xf32>
      %cst_21 = arith.constant dense<0.000000e+00> : vector<1xf32>
      %39 = vector.multi_reduction <add>, %38, %cst_21 [1, 2] : vector<1x16x128xf32> to vector<1xf32>
      %40 = vector.shape_cast %39 : vector<1xf32> to vector<1x1x1xf32>
      %41 = vector.extract %40[0, 0, 0] : f32 from vector<1x1x1xf32>
      %c0_22 = arith.constant 0 : index
      %c0_23 = arith.constant 0 : index
      %42 = vector.load %arg5[%c0_22, %c0_23] : memref<16x128xf32, #tpu.memory_space<vmem>>, vector<16x128xf32>
      %43 = vector.shape_cast %42 : vector<16x128xf32> to vector<1x16x128xf32>
      %cst_24 = arith.constant dense<0.000000e+00> : vector<1xf32>
      %44 = vector.multi_reduction <add>, %43, %cst_24 [1, 2] : vector<1x16x128xf32> to vector<1xf32>
      %45 = vector.shape_cast %44 : vector<1xf32> to vector<1x1x1xf32>
      %46 = vector.extract %45[0, 0, 0] : f32 from vector<1x1x1xf32>
      %cst_25 = arith.constant 2.000000e+00 : f32
      %47 = arith.mulf %cst_25, %41 : f32
      %cst_26 = arith.constant 1.000000e-07 : f32
      %48 = arith.addf %47, %cst_26 : f32
      %cst_27 = arith.constant 1.000000e-07 : f32
      %49 = arith.addf %46, %cst_27 : f32
      %50 = arith.divf %48, %49 : f32
      %c0_28 = arith.constant 0 : index
      %c0_29 = arith.constant 0 : index
      %51 = memref.load %arg3[%c0_28, %c0_29] : memref<1x1xf32, #tpu.memory_space<smem>>
      memref.store %50, %arg3[%c0_28, %c0_29] : memref<1x1xf32, #tpu.memory_space<smem>>
    } else {
    }
    return
  }
  func.func @transform_0(%arg0: i32) -> (i32, i32) {
    %c0_i32 = arith.constant 0 : i32
    %c0_i32_0 = arith.constant 0 : i32
    return %arg0, %c0_i32 : i32, i32
  }
  func.func @transform_1(%arg0: i32) -> (i32, i32) {
    %c0_i32 = arith.constant 0 : i32
    %c0_i32_0 = arith.constant 0 : i32
    return %arg0, %c0_i32 : i32, i32
  }
  func.func @transform_2(%arg0: i32) -> (i32, i32) {
    %c0_i32 = arith.constant 0 : i32
    %c0_i32_0 = arith.constant 0 : i32
    %c0_i32_1 = arith.constant 0 : i32
    return %c0_i32, %c0_i32_0 : i32, i32
  }
}

</mosaic_0001>

<llo_original>
// kernel: tpu_custom_call.1
$region0: #{tpu_custom_call.1}
  #allocation0 [shape = 'u32[]', space=smem, size = 0x4, offset = 0x4, fixed_abs, tag = 'smem constant byte address 0x4 - core index']
  #allocation1 [shape = 'u32[144,128]{1,0:T(1,128)}', space=vmem, size = 0x12000, scoped, tag = 'internal scratch']
  #allocation2 [shape = 'f32[16,128]{1,0:T(8,128)}', space=vmem, size = 0x2000, scoped, tag = 'scratch operand']
  #allocation3 [shape = 'f32[16,128]{1,0:T(8,128)}', space=vmem, size = 0x2000, scoped, tag = 'scratch operand']
  %s0 = inlined_call_operand.hbm [shape: f32[16,128], index: 0, kind: input, shape index: {}]
  %s1 = inlined_call_operand.hbm [shape: f32[16,128], index: 1, kind: input, shape index: {}]
  %s2 = inlined_call_operand.hbm [shape: f32[1,1], index: 2, kind: output, shape index: {}]
  %s3 = sld [smem:[#allocation0]]
  $region34: #{tpu_custom_call.1} parent=0
    _
  %s5 = ssub.s32 1, %s3
  %s6 = scalar_select 0, %s5, %s3
  $region1: #{tpu_custom_call.1} parent=0
    #allocation4 [shape = 'u8[8192]{0}', space=vmem, size = 0x2000, scoped, tag = 'input window, operand 0, single buffered']
    #allocation5 [shape = 's32[1]{0}', space=sflag, size = 0x4, scoped, tag = 'scoped memory for tpu_custom_call.1']
    #allocation6 [shape = 's32[1]{0}', space=sflag, size = 0x4, scoped, tag = 'scoped memory for tpu_custom_call.1']
    #allocation7 [shape = 'u8[8192]{0}', space=vmem, size = 0x2000, scoped, tag = 'input window, operand 1, single buffered']
    #allocation8 [shape = 's32[1]{0}', space=sflag, size = 0x4, scoped, tag = 'scoped memory for tpu_custom_call.1']
    #allocation9 [shape = 'u8[512]{0}', space=smem, size = 0x200, scoped, tag = 'output window, operand 0, single buffered']
    %7 = vsyncpa [#allocation5], 0
    %8 = vsyncpa [#allocation8], 0
    %9 = vsyncpa [#allocation6], 0
    // Predicated region
    $region2: #{tpu_custom_call.1} parent=1 // pred_check
      _
    $region3: #{tpu_custom_call.1} parent=1 // pred_check_branch
      %11 = sbr.rel (0) target = $region5
    $region4: #{tpu_custom_call.1} parent=1 // pred_region
      %s13 = ssub.s32 256, 256
      %14 = vsyncadd [#allocation5], %s13
      %s15 = sshll.u32 [#allocation4], 4
      %s16 = int_to_ptr.vmem [resolvable:$true] %s15
      %21 = dma.hbm_to_vmem [thread:$0]  %s0, 256, %s16, [#allocation5], 128, 128, 8
    $region5: #{tpu_custom_call.1} parent=1 // pred_fallthru
      _
    // Predicated region
    $region6: #{tpu_custom_call.1} parent=1 // pred_check
      _
    $region7: #{tpu_custom_call.1} parent=1 // pred_check_branch
      %23 = sbr.rel (0) target = $region9
    $region8: #{tpu_custom_call.1} parent=1 // pred_region
      %s25 = ssub.s32 256, 256
      %26 = vsyncadd [#allocation8], %s25
      %s27 = sshll.u32 [#allocation7], 4
      %s28 = int_to_ptr.vmem [resolvable:$true] %s27
      %33 = dma.hbm_to_vmem [thread:$0]  %s1, 256, %s28, [#allocation8], 128, 128, 8
    $region9: #{tpu_custom_call.1} parent=1 // pred_fallthru
      _
    // Predicated region
    $region10: #{tpu_custom_call.1} parent=1 // pred_check
      _
    $region11: #{tpu_custom_call.1} parent=1 // pred_check_branch
      %35 = sbr.rel (0) target = $region13
    $region12: #{tpu_custom_call.1} parent=1 // pred_region
      %36 = dma.done [#allocation5], 256
    $region13: #{tpu_custom_call.1} parent=1 // pred_fallthru
      _
    // Predicated region
    $region14: #{tpu_custom_call.1} parent=1 // pred_check
      _
    $region15: #{tpu_custom_call.1} parent=1 // pred_check_branch
      %38 = sbr.rel (0) target = $region17
    $region16: #{tpu_custom_call.1} parent=1 // pred_region
      %39 = dma.done [#allocation8], 256
    $region17: #{tpu_custom_call.1} parent=1 // pred_fallthru
      _
    %p40 = scmp.eq.s32.totalorder 0, 0
    // Predicated region
    $region18: #{tpu_custom_call.1} parent=1 // pred_check
      %p41 = pneg %p40
    $region19: #{tpu_custom_call.1} parent=1 // pred_check_branch
      %43 = sbr.rel (%p41) target = $region21
    $region20: #{tpu_custom_call.1} parent=1 // pred_region
      %44 = vst [vmem:[#allocation2] sm:$0xff] 0.0
      %45 = vst [vmem:[#allocation2 + $0x8] sm:$0xff] 0.0
      %46 = vst [vmem:[#allocation3] sm:$0xff] 0.0
      %47 = vst [vmem:[#allocation3 + $0x8] sm:$0xff] 0.0
    $region21: #{tpu_custom_call.1} parent=1 // pred_fallthru
      _
    %v48 = vld [vmem:[#allocation4] sm:$0xff]
    %v49 = vld [vmem:[#allocation4 + $0x8] sm:$0xff]
    %v50 = vld [vmem:[#allocation7] sm:$0xff]
    %v51 = vld [vmem:[#allocation7 + $0x8] sm:$0xff]
    %v52 = vlaneseq
    %v53 = vshrl.u32 %v52, 7
    %v54 = vadd.s32 %v53, 8
    %v55 = vlaneseq
    %v56 = vand.u32 %v55, 127
    %s57 = smul.u32 0, 16
    %v58 = vstv %s57
    %v59 = vadd.s32 %v58, %v53
    %v60 = vadd.s32 %v58, %v54
    %v61 = vmul.u32 %v59, 128
    %v62 = vmul.u32 %v60, 128
    %v63 = vadd.s32 %v61, %v56
    %v64 = vadd.s32 %v62, %v56
    %vm65 = vcmp.lt.s32.totalorder %v63, 2048
    %vm66 = vcmp.lt.s32.totalorder %v64, 2048
    %vm67 = vcmp.gt.f32.partialorder %v48, 0.5
    %vm68 = vcmp.gt.f32.partialorder %v49, 0.5
    %v69 = vsel %vm67, 1.0, 0.0
    %v70 = vsel %vm68, 1.0, 0.0
    %v71 = vsel %vm65, %v69, 0.0
    %v72 = vsel %vm66, %v70, 0.0
    %v73 = vsel %vm65, %v50, 0.0
    %v74 = vsel %vm66, %v51, 0.0
    %v75 = vld [vmem:[#allocation2] sm:$0xff]
    %v76 = vld [vmem:[#allocation2 + $0x8] sm:$0xff]
    %v77 = vmul.f32 %v73, %v71
    %v78 = vmul.f32 %v74, %v72
    %v79 = vadd.f32 %v75, %v77
    %v80 = vadd.f32 %v76, %v78
    %81 = vst [vmem:[#allocation2] sm:$0xff] %v79
    %82 = vst [vmem:[#allocation2 + $0x8] sm:$0xff] %v80
    %v83 = vld [vmem:[#allocation3] sm:$0xff]
    %v84 = vld [vmem:[#allocation3 + $0x8] sm:$0xff]
    %v85 = vadd.f32 %v71, %v73
    %v86 = vadd.f32 %v72, %v74
    %v87 = vadd.f32 %v83, %v85
    %v88 = vadd.f32 %v84, %v86
    %89 = vst [vmem:[#allocation3] sm:$0xff] %v87
    %90 = vst [vmem:[#allocation3 + $0x8] sm:$0xff] %v88
    // Predicated region
    $region22: #{tpu_custom_call.1} parent=1 // pred_check
      %p91 = pneg %p40
    $region23: #{tpu_custom_call.1} parent=1 // pred_check_branch
      %93 = sbr.rel (%p91) target = $region25
    $region24: #{tpu_custom_call.1} parent=1 // pred_region
      %v94 = vld [vmem:[#allocation2] sm:$0xff]
      %v95 = vld [vmem:[#allocation2 + $0x8] sm:$0xff]
      %v96 = vadd.f32 %v94, %v95
      %97 = vadd.xlane.f32.xlu0 %v96
      %v98 = vpop.xlane.xlu0 %97
      %v99 = vrot.slane %v98, 4
      %v100 = vadd.f32 %v98, %v99
      %v101 = vrot.slane %v100, 2
      %v102 = vadd.f32 %v100, %v101
      %v103 = vrot.slane %v102, 1
      %v104 = vadd.f32 %v102, %v103
      %s105 = vtos %v104
      %v106 = vld [vmem:[#allocation3] sm:$0xff]
      %v107 = vld [vmem:[#allocation3 + $0x8] sm:$0xff]
      %v108 = vadd.f32 %v106, %v107
      %109 = vadd.xlane.f32.xlu0 %v108
      %v110 = vpop.xlane.xlu0 %109
      %v111 = vrot.slane %v110, 4
      %v112 = vadd.f32 %v110, %v111
      %v113 = vrot.slane %v112, 2
      %v114 = vadd.f32 %v112, %v113
      %v115 = vrot.slane %v114, 1
      %v116 = vadd.f32 %v114, %v115
      %s117 = vtos %v116
      %s118 = smul.f32 %s105, 2.0
      %s119 = sadd.f32 %s118, 1e-07
      %s120 = sadd.f32 %s117, 1e-07
      %v121 = vstv %s120
      %v122 = vrcp.pop %v121
      %s123 = vtos %v122
      %s124 = smul.f32 %s119, %s123
      %s125 = scalar_lea.smem [#allocation9], 0
      %126 = sst [smem:[%s125]] %s124
    $region25: #{tpu_custom_call.1} parent=1 // pred_fallthru
      _
    // Predicated region
    $region26: #{tpu_custom_call.1} parent=1 // pred_check
      _
    $region27: #{tpu_custom_call.1} parent=1 // pred_check_branch
      %128 = sbr.rel (0) target = $region29
    $region28: #{tpu_custom_call.1} parent=1 // pred_region
      %s130 = ssub.s32 16, 16
      %131 = vsyncadd [#allocation6], %s130
      %134 = dma.smem_to_hbm [#allocation9], 16, %s2, [#allocation6]
    $region29: #{tpu_custom_call.1} parent=1 // pred_fallthru
      _
    // Predicated region
    $region30: #{tpu_custom_call.1} parent=1 // pred_check
      _
    $region31: #{tpu_custom_call.1} parent=1 // pred_check_branch
      %136 = sbr.rel (0) target = $region33
    $region32: #{tpu_custom_call.1} parent=1 // pred_region
      %137 = dma.done [#allocation6], 16
    $region33: #{tpu_custom_call.1} parent=1 // pred_fallthru
      _
    %138 = sfence
    %139 = vsyncpa [#allocation5], 1
    %140 = vsyncpa [#allocation8], 1
    %141 = vsyncpa [#allocation6], 1

</llo_original>
